<compile_context>
chip_gen: v5e
topology: v5e:2x2
jax: 0.10.0
libtpu: 0.0.40
codegen_flags: <defaults>
</compile_context>

<pallas_src>
import math
from functools import partial

import jax
import jax.numpy as jnp
from jax.experimental import pallas as pl
from jax.experimental.pallas import tpu as pltpu


def _decoder_kernel(
    emb_ref,                      # [B, T, E]      f32 (tok + pos embedding)
    enc_ct_ref,                   # [B, E, S]      bf16 (encoder_conved, pre-transposed)
    enc_m_ref,                    # [B, S, E]      bf16 (encoder_combined)
    w_e2h_ref, b_e2h_ref,         # [E, H] bf16,   [1, H] f32
    w_cat_ref, b_cat_ref,         # [L, K*H, 2H] bf16, [L, 2H] f32  (fused conv a|gate)
    w_ah2e_ref, b_ah2e_ref,       # [L, H, E] bf16, [L, E] f32
    w_ae2h_ref, b_ae2h_ref,       # [L, E, H] bf16, [L, H] f32
    w_h2e_ref, b_h2e_ref,         # [H, E] bf16,   [1, E] f32
    w_fc_ref, b_fc_ref,           # [E, Vp] bf16,  [1, Vp] f32 (lane-dense padded vocab)
    out_ref, attn_ref,            # [B, T, Vp] f32, [B, T, S] f32
    *, n_layers, kernel_size, pad_val, B, T, H,
):
    scale = jnp.float32(math.sqrt(0.5))
    cdt = jnp.bfloat16  # MXU operand dtype; accumulation stays f32

    def mm(x3, w, b):
        """[B,T,Cin] f32 x [Cin,Cout] bf16 (+ [1,Cout] f32 bias) -> [B,T,Cout] f32.

        Batch is folded into the matmul M dimension (M = B*T)."""
        bb, tt, ci = x3.shape
        y = jnp.dot(x3.reshape(bb * tt, ci).astype(cdt), w,
                    preferred_element_type=jnp.float32) + b
        return y.reshape(bb, tt, w.shape[-1])

    emb3 = emb_ref[...]                        # [B, T, E] f32 (dropout = identity)
    enc_ct = enc_ct_ref[...]                   # [B, E, S] bf16
    enc_m = enc_m_ref[...]                     # [B, S, E] bf16

    # conv_input = emb2hid(embedded)                          -> [B, T, H]
    conv_input = mm(emb3, w_e2h_ref[...], b_e2h_ref[...])

    # Causal left-pad rows (value = trg_pad_idx), built once, reused every layer.
    pad_blk = jnp.full((B, kernel_size - 1, H), pad_val, jnp.float32)

    attn = None
    for l in range(n_layers):
        # ---- causal Conv1d + GLU: all K taps and both halves in ONE matmul ----
        padded = jnp.concatenate([pad_blk, conv_input], axis=1)   # [B, T+K-1, H]
        x_cat = jnp.concatenate(
            [padded[:, j:j + T, :] for j in range(kernel_size)], axis=-1
        )                                                         # [B, T, K*H]
        conv_out = mm(x_cat, w_cat_ref[l], b_cat_ref[pl.ds(l, 1), :])   # [B, T, 2H]
        glu = conv_out[..., :H] * jax.nn.sigmoid(conv_out[..., H:])     # [B, T, H]

        # ---- attention over the encoder ----
        conved_emb = mm(glu, w_ah2e_ref[l], b_ah2e_ref[pl.ds(l, 1), :])  # [B, T, E]
        combined = (conved_emb + emb3) * scale                           # [B, T, E]
        energy = jnp.einsum("bte,bes->bts", combined.astype(cdt), enc_ct,
                            preferred_element_type=jnp.float32)          # [B, T, S]
        energy = energy - jnp.max(energy, axis=-1, keepdims=True)
        p = jnp.exp(energy)
        attn = p * pl.reciprocal(jnp.sum(p, axis=-1, keepdims=True), approx=True)
        attended = jnp.einsum("bts,bse->bte", attn.astype(cdt), enc_m,
                              preferred_element_type=jnp.float32)        # [B, T, E]
        attended = mm(attended, w_ae2h_ref[l], b_ae2h_ref[pl.ds(l, 1), :])  # [B, T, H]
        conved = (glu + attended) * scale
        conv_input = (conved + conv_input) * scale                # residual

    # ---- hid2emb + fc_out ----
    conved_e = mm(conv_input, w_h2e_ref[...], b_h2e_ref[...])     # [B, T, E]
    out = mm(conved_e, w_fc_ref[...], b_fc_ref[...])              # [B, T, Vp]

    out_ref[...] = out
    attn_ref[...] = attn


def conv_decoder_forward(trg, encoder_conved, encoder_combined, params, *,
                         kernel_size, trg_pad_idx, n_layers):
    B, T = trg.shape
    S = encoder_conved.shape[1]
    E = params["tok_emb"].shape[1]
    H = params["w_e2h"].shape[1]
    V = params["w_fc"].shape[1]
    L, K = n_layers, kernel_size
    cdt = jnp.bfloat16

    # Glue: embedding gathers in plain JAX (dropout is identity in eval mode).
    pos = jnp.arange(T)[None, :]
    embedded = (params["tok_emb"][trg] + params["pos_emb"][pos]).astype(jnp.float32)

    # Pre-transpose encoder_conved once -> plain [T,E]@[E,S] energy matmuls.
    enc_ct = jnp.swapaxes(encoder_conved, 1, 2).astype(cdt)       # [B, E, S]
    enc_m = encoder_combined.astype(cdt)                          # [B, S, E]

    # Fuse K conv taps + a/gate halves into one [K*H, 2H] weight per layer.
    w_cat = jnp.concatenate([params["w_conv_a"], params["w_conv_g"]], axis=-1)
    w_cat = w_cat.reshape(L, K * H, 2 * H).astype(cdt)            # rows: tap-major
    b_cat = jnp.concatenate([params["b_conv_a"], params["b_conv_g"]], axis=-1)

    # Pad the vocab dim to a lane-dense multiple of 128 (sliced off after the call).
    Vp = ((V + 127) // 128) * 128
    w_fc = jnp.zeros((E, Vp), cdt).at[:, :V].set(params["w_fc"].astype(cdt))
    b_fc = jnp.zeros((1, Vp), jnp.float32).at[:, :V].set(params["b_fc"])

    args = (
        embedded, enc_ct, enc_m,
        params["w_e2h"].astype(cdt), params["b_e2h"],
        w_cat, b_cat,
        params["w_ah2e"].astype(cdt), params["b_ah2e"],
        params["w_ae2h"].astype(cdt), params["b_ae2h"],
        params["w_h2e"].astype(cdt), params["b_h2e"],
        w_fc, b_fc,
    )

    kernel = partial(_decoder_kernel, n_layers=L, kernel_size=K,
                     pad_val=float(trg_pad_idx), B=B, T=T, H=H)

    def full(shape):
        return pl.BlockSpec(shape, lambda i, _n=len(shape): (0,) * _n)

    # Size the scoped VMEM limit from the actual operands (with headroom).
    in_bytes = sum(int(a.size) * a.dtype.itemsize for a in args)
    out_bytes = B * T * (Vp + S) * 4
    vmem_limit = int(min(64 * 2**20, max(32 * 2**20, 4 * (in_bytes + out_bytes))))

    out, attn = pl.pallas_call(
        kernel,
        grid=(1,),
        in_specs=[
            full((B, T, E)), full((B, E, S)), full((B, S, E)),
            full((E, H)), full((1, H)),
            full((L, K * H, 2 * H)), full((L, 2 * H)),
            full((L, H, E)), full((L, E)),
            full((L, E, H)), full((L, H)),
            full((H, E)), full((1, E)),
            full((E, Vp)), full((1, Vp)),
        ],
        out_specs=[full((B, T, Vp)), full((B, T, S))],
        out_shape=(
            jax.ShapeDtypeStruct((B, T, Vp), jnp.float32),
            jax.ShapeDtypeStruct((B, T, S), jnp.float32),
        ),
        compiler_params=pltpu.CompilerParams(
            dimension_semantics=("arbitrary",),
            vmem_limit_bytes=vmem_limit,
        ),
    )(*args)
    return out[..., :V], attn


def decoder_ref(trg, enc_c, enc_m, params, *, kernel_size, trg_pad_idx, n_layers):
    """Pure-JAX f32 reference mirroring the PyTorch forward (eval mode)."""
    B, T = trg.shape
    H = params["w_e2h"].shape[1]
    scale = jnp.float32(math.sqrt(0.5))
    pos = jnp.arange(T)[None, :]
    embedded = (params["tok_emb"][trg] + params["pos_emb"][pos]).astype(jnp.float32)
    conv_input = embedded @ params["w_e2h"] + params["b_e2h"][0]
    attn = None
    for l in range(n_layers):
        pad = jnp.full((B, kernel_size - 1, H), float(trg_pad_idx), jnp.float32)
        xp = jnp.concatenate([pad, conv_input], axis=1)          # [B, T+k-1, H]
        a = jnp.zeros((B, T, H), jnp.float32) + params["b_conv_a"][l]
        g = jnp.zeros((B, T, H), jnp.float32) + params["b_conv_g"][l]
        for j in range(kernel_size):
            a = a + xp[:, j:j + T, :] @ params["w_conv_a"][l, j]
            g = g + xp[:, j:j + T, :] @ params["w_conv_g"][l, j]
        glu = a * jax.nn.sigmoid(g)
        conved_emb = glu @ params["w_ah2e"][l] + params["b_ah2e"][l]
        combined = (conved_emb + embedded) * scale
        energy = jnp.einsum("bte,bse->bts", combined, enc_c)
        attn = jax.nn.softmax(energy, axis=-1)
        attended = jnp.einsum("bts,bse->bte", attn, enc_m)
        attended = attended @ params["w_ae2h"][l] + params["b_ae2h"][l]
        conved = (glu + attended) * scale
        conv_input = (conved + conv_input) * scale
    conved_e = conv_input @ params["w_h2e"] + params["b_h2e"][0]
    out = conved_e @ params["w_fc"] + params["b_fc"][0]
    return out, attn


def init_params(key, V, E, H, L, k, max_length):
    keys = jax.random.split(key, 16)
    f = lambda i, shape: jax.random.normal(keys[i], shape, jnp.float32) * 0.1
    return dict(
        tok_emb=f(0, (V, E)),
        pos_emb=f(1, (max_length, E)),
        w_e2h=f(2, (E, H)), b_e2h=f(3, (1, H)),
        w_conv_a=f(4, (L, k, H, H)), b_conv_a=f(5, (L, H)),
        w_conv_g=f(6, (L, k, H, H)), b_conv_g=f(7, (L, H)),
        w_ah2e=f(8, (L, H, E)), b_ah2e=f(9, (L, E)),
        w_ae2h=f(10, (L, E, H)), b_ae2h=f(11, (L, H)),
        w_h2e=f(12, (H, E)), b_h2e=f(13, (1, E)),
        w_fc=f(14, (E, V)), b_fc=f(15, (1, V)),
    )


if __name__ == "__main__":
    # small shapes consistent with the module
    B, T, S = 2, 8, 8          # batch, target len, source len
    V, E, H = 32, 32, 32       # output_dim, emb_dim, hid_dim
    L, K = 2, 3                # n_layers, kernel_size
    TRG_PAD_IDX = 1
    MAX_LEN = 100

    root = jax.random.PRNGKey(0)
    kp, kt, kc, km = jax.random.split(root, 4)
    params = init_params(kp, V, E, H, L, K, MAX_LEN)

    trg = jax.random.randint(kt, (B, T), 0, V, dtype=jnp.int32)
    encoder_conved = jax.random.normal(kc, (B, S, E), jnp.float32)
    encoder_combined = jax.random.normal(km, (B, S, E), jnp.float32)

    out, attn = conv_decoder_forward(
        trg, encoder_conved, encoder_combined, params,
        kernel_size=K, trg_pad_idx=TRG_PAD_IDX, n_layers=L)
    out = jax.block_until_ready(out)
    attn = jax.block_until_ready(attn)

    out_r, attn_r = decoder_ref(
        trg, encoder_conved, encoder_combined, params,
        kernel_size=K, trg_pad_idx=TRG_PAD_IDX, n_layers=L)

    assert out.shape == (B, T, V) and attn.shape == (B, T, S)
    # bf16 matmul operands + approx reciprocal -> compare against f32 ref with
    # bf16-appropriate tolerances.
    assert jnp.allclose(out, out_r, atol=3e-2, rtol=3e-2), \
        f"out max |diff| = {jnp.max(jnp.abs(out - out_r))}"
    assert jnp.allclose(attn, attn_r, atol=3e-2, rtol=3e-2), \
        f"attn max |diff| = {jnp.max(jnp.abs(attn - attn_r))}"
    print("KERNEL_OK")
</pallas_src>

<mosaic_0001>
module attributes {stable_mosaic.version = 11 : i64} {
  func.func @_decoder_kernel(%arg0: i32, %arg1: memref<2x8x32xf32, #tpu.memory_space<vmem>>, %arg2: memref<2x32x8xbf16, #tpu.memory_space<vmem>>, %arg3: memref<2x8x32xbf16, #tpu.memory_space<vmem>>, %arg4: memref<32x32xbf16, #tpu.memory_space<vmem>>, %arg5: memref<1x32xf32, #tpu.memory_space<vmem>>, %arg6: memref<2x96x64xbf16, #tpu.memory_space<vmem>>, %arg7: memref<2x64xf32, #tpu.memory_space<vmem>>, %arg8: memref<2x32x32xbf16, #tpu.memory_space<vmem>>, %arg9: memref<2x32xf32, #tpu.memory_space<vmem>>, %arg10: memref<2x32x32xbf16, #tpu.memory_space<vmem>>, %arg11: memref<2x32xf32, #tpu.memory_space<vmem>>, %arg12: memref<32x32xbf16, #tpu.memory_space<vmem>>, %arg13: memref<1x32xf32, #tpu.memory_space<vmem>>, %arg14: memref<32x128xbf16, #tpu.memory_space<vmem>>, %arg15: memref<1x128xf32, #tpu.memory_space<vmem>>, %arg16: memref<2x8x128xf32, #tpu.memory_space<vmem>>, %arg17: memref<2x8x8xf32, #tpu.memory_space<vmem>>) attributes {dimension_semantics = [#tpu.dimension_semantics<arbitrary>], iteration_bounds = array<i64: 1>, scalar_prefetch = 0 : i64, scratch_operands = 0 : i64, tpu.core_type = #tpu.core_type<tc>, window_params = [{pipeline_mode = #tpu.pipeline_mode<synchronous>, transform_indices = @transform_0, window_bounds = array<i64: 2, 8, 32>}, {pipeline_mode = #tpu.pipeline_mode<synchronous>, transform_indices = @transform_1, window_bounds = array<i64: 2, 32, 8>}, {pipeline_mode = #tpu.pipeline_mode<synchronous>, transform_indices = @transform_2, window_bounds = array<i64: 2, 8, 32>}, {pipeline_mode = #tpu.pipeline_mode<synchronous>, transform_indices = @transform_3, window_bounds = array<i64: 32, 32>}, {pipeline_mode = #tpu.pipeline_mode<synchronous>, transform_indices = @transform_4, window_bounds = array<i64: 1, 32>}, {pipeline_mode = #tpu.pipeline_mode<synchronous>, transform_indices = @transform_5, window_bounds = array<i64: 2, 96, 64>}, {pipeline_mode = #tpu.pipeline_mode<synchronous>, transform_indices = @transform_6, window_bounds = array<i64: 2, 64>}, {pipeline_mode = #tpu.pipeline_mode<synchronous>, transform_indices = @transform_7, window_bounds = array<i64: 2, 32, 32>}, {pipeline_mode = #tpu.pipeline_mode<synchronous>, transform_indices = @transform_8, window_bounds = array<i64: 2, 32>}, {pipeline_mode = #tpu.pipeline_mode<synchronous>, transform_indices = @transform_9, window_bounds = array<i64: 2, 32, 32>}, {pipeline_mode = #tpu.pipeline_mode<synchronous>, transform_indices = @transform_10, window_bounds = array<i64: 2, 32>}, {pipeline_mode = #tpu.pipeline_mode<synchronous>, transform_indices = @transform_11, window_bounds = array<i64: 32, 32>}, {pipeline_mode = #tpu.pipeline_mode<synchronous>, transform_indices = @transform_12, window_bounds = array<i64: 1, 32>}, {pipeline_mode = #tpu.pipeline_mode<synchronous>, transform_indices = @transform_13, window_bounds = array<i64: 32, 128>}, {pipeline_mode = #tpu.pipeline_mode<synchronous>, transform_indices = @transform_14, window_bounds = array<i64: 1, 128>}, {pipeline_mode = #tpu.pipeline_mode<synchronous>, transform_indices = @transform_15, window_bounds = array<i64: 2, 8, 128>}, {pipeline_mode = #tpu.pipeline_mode<synchronous>, transform_indices = @transform_16, window_bounds = array<i64: 2, 8, 8>}]} {
    %c0 = arith.constant 0 : index
    %c0_0 = arith.constant 0 : index
    %c0_1 = arith.constant 0 : index
    %0 = vector.load %arg1[%c0, %c0_0, %c0_1] : memref<2x8x32xf32, #tpu.memory_space<vmem>>, vector<2x8x32xf32>
    %c0_2 = arith.constant 0 : index
    %c0_3 = arith.constant 0 : index
    %c0_4 = arith.constant 0 : index
    %1 = vector.load %arg2[%c0_2, %c0_3, %c0_4] : memref<2x32x8xbf16, #tpu.memory_space<vmem>>, vector<2x32x8xbf16>
    %c0_5 = arith.constant 0 : index
    %c0_6 = arith.constant 0 : index
    %c0_7 = arith.constant 0 : index
    %2 = vector.load %arg3[%c0_5, %c0_6, %c0_7] : memref<2x8x32xbf16, #tpu.memory_space<vmem>>, vector<2x8x32xbf16>
    %c0_8 = arith.constant 0 : index
    %c0_9 = arith.constant 0 : index
    %3 = vector.load %arg4[%c0_8, %c0_9] : memref<32x32xbf16, #tpu.memory_space<vmem>>, vector<32x32xbf16>
    %c0_10 = arith.constant 0 : index
    %c0_11 = arith.constant 0 : index
    %4 = vector.load %arg5[%c0_10, %c0_11] : memref<1x32xf32, #tpu.memory_space<vmem>>, vector<1x32xf32>
    %5 = vector.shape_cast %0 : vector<2x8x32xf32> to vector<16x32xf32>
    %6 = arith.truncf %5 : vector<16x32xf32> to vector<16x32xbf16>
    %cst = arith.constant dense<0.000000e+00> : vector<16x32xf32>
    %7 = tpu.matmul %6, %3, %cst {dimension_numbers = #tpu.dot_dimension_numbers<[1], [0], [0], [1], [0, 0, 1, 1], [], []>} : vector<16x32xbf16>, vector<32x32xbf16>, vector<16x32xf32> -> vector<16x32xf32>
    %8 = vector.broadcast %4 : vector<1x32xf32> to vector<16x32xf32>
    %9 = arith.addf %7, %8 : vector<16x32xf32>
    %10 = vector.shape_cast %9 : vector<16x32xf32> to vector<2x8x32xf32>
    %cst_12 = arith.constant 1.000000e+00 : f32
    %11 = vector.broadcast %cst_12 : f32 to vector<2x2x32xf32>
    %12 = tpu.concatenate %11, %10 in 1 : vector<2x2x32xf32>, vector<2x8x32xf32> -> vector<2x10x32xf32>
    %13 = vector.extract_strided_slice %12 {offsets = [0, 0, 0], sizes = [2, 8, 32], strides = [1, 1, 1]} : vector<2x10x32xf32> to vector<2x8x32xf32>
    %14 = vector.extract_strided_slice %12 {offsets = [0, 1, 0], sizes = [2, 8, 32], strides = [1, 1, 1]} : vector<2x10x32xf32> to vector<2x8x32xf32>
    %15 = vector.extract_strided_slice %12 {offsets = [0, 2, 0], sizes = [2, 8, 32], strides = [1, 1, 1]} : vector<2x10x32xf32> to vector<2x8x32xf32>
    %16 = tpu.concatenate %13, %14, %15 in 2 : vector<2x8x32xf32>, vector<2x8x32xf32>, vector<2x8x32xf32> -> vector<2x8x96xf32>
    %c0_13 = arith.constant 0 : index
    %c0_14 = arith.constant 0 : index
    %c0_15 = arith.constant 0 : index
    %17 = vector.load %arg6[%c0_13, %c0_14, %c0_15] : memref<2x96x64xbf16, #tpu.memory_space<vmem>>, vector<1x96x64xbf16>
    %18 = vector.shape_cast %17 : vector<1x96x64xbf16> to vector<96x64xbf16>
    %c0_16 = arith.constant 0 : index
    %c0_17 = arith.constant 0 : index
    %19 = vector.load %arg7[%c0_16, %c0_17] : memref<2x64xf32, #tpu.memory_space<vmem>>, vector<1x64xf32>
    %20 = vector.shape_cast %16 : vector<2x8x96xf32> to vector<16x96xf32>
    %21 = arith.truncf %20 : vector<16x96xf32> to vector<16x96xbf16>
    %cst_18 = arith.constant dense<0.000000e+00> : vector<16x64xf32>
    %22 = tpu.matmul %21, %18, %cst_18 {dimension_numbers = #tpu.dot_dimension_numbers<[1], [0], [0], [1], [0, 0, 1, 1], [], []>} : vector<16x96xbf16>, vector<96x64xbf16>, vector<16x64xf32> -> vector<16x64xf32>
    %23 = vector.broadcast %19 : vector<1x64xf32> to vector<16x64xf32>
    %24 = arith.addf %22, %23 : vector<16x64xf32>
    %25 = vector.shape_cast %24 : vector<16x64xf32> to vector<2x8x64xf32>
    %26 = vector.extract_strided_slice %25 {offsets = [0, 0, 0], sizes = [2, 8, 32], strides = [1, 1, 1]} : vector<2x8x64xf32> to vector<2x8x32xf32>
    %27 = vector.extract_strided_slice %25 {offsets = [0, 0, 32], sizes = [2, 8, 32], strides = [1, 1, 1]} : vector<2x8x64xf32> to vector<2x8x32xf32>
    %28 = arith.negf %27 : vector<2x8x32xf32>
    %29 = math.exp %28 : vector<2x8x32xf32>
    %cst_19 = arith.constant 1.000000e+00 : f32
    %30 = vector.broadcast %cst_19 : f32 to vector<2x8x32xf32>
    %31 = arith.addf %30, %29 : vector<2x8x32xf32>
    %32 = arith.divf %30, %31 : vector<2x8x32xf32>
    %33 = arith.mulf %26, %32 : vector<2x8x32xf32>
    %c0_20 = arith.constant 0 : index
    %c0_21 = arith.constant 0 : index
    %c0_22 = arith.constant 0 : index
    %34 = vector.load %arg8[%c0_20, %c0_21, %c0_22] : memref<2x32x32xbf16, #tpu.memory_space<vmem>>, vector<1x32x32xbf16>
    %35 = vector.shape_cast %34 : vector<1x32x32xbf16> to vector<32x32xbf16>
    %c0_23 = arith.constant 0 : index
    %c0_24 = arith.constant 0 : index
    %36 = vector.load %arg9[%c0_23, %c0_24] : memref<2x32xf32, #tpu.memory_space<vmem>>, vector<1x32xf32>
    %37 = vector.shape_cast %33 : vector<2x8x32xf32> to vector<16x32xf32>
    %38 = arith.truncf %37 : vector<16x32xf32> to vector<16x32xbf16>
    %cst_25 = arith.constant dense<0.000000e+00> : vector<16x32xf32>
    %39 = tpu.matmul %38, %35, %cst_25 {dimension_numbers = #tpu.dot_dimension_numbers<[1], [0], [0], [1], [0, 0, 1, 1], [], []>} : vector<16x32xbf16>, vector<32x32xbf16>, vector<16x32xf32> -> vector<16x32xf32>
    %40 = vector.broadcast %36 : vector<1x32xf32> to vector<16x32xf32>
    %41 = arith.addf %39, %40 : vector<16x32xf32>
    %42 = vector.shape_cast %41 : vector<16x32xf32> to vector<2x8x32xf32>
    %43 = arith.addf %42, %0 : vector<2x8x32xf32>
    %cst_26 = arith.constant 0.707106769 : f32
    %44 = vector.broadcast %cst_26 : f32 to vector<2x8x32xf32>
    %45 = arith.mulf %43, %44 : vector<2x8x32xf32>
    %46 = arith.truncf %45 : vector<2x8x32xf32> to vector<2x8x32xbf16>
    "tpu.trace_start"() <{level = 10 : i32, message = "bte,bes->bts"}> : () -> ()
    %cst_27 = arith.constant dense<0.000000e+00> : vector<2x8x8xf32>
    %47 = tpu.matmul %46, %1, %cst_27 {dimension_numbers = #tpu.dot_dimension_numbers<[2], [1], [1], [2], [0, 0, 0, 1, 1, 2], [0], [0]>} : vector<2x8x32xbf16>, vector<2x32x8xbf16>, vector<2x8x8xf32> -> vector<2x8x8xf32>
    "tpu.trace_stop"() : () -> ()
    %cst_28 = arith.constant dense<0xFF800000> : vector<2x8xf32>
    %48 = vector.multi_reduction <maximumf>, %47, %cst_28 [2] : vector<2x8x8xf32> to vector<2x8xf32>
    %49 = vector.shape_cast %48 : vector<2x8xf32> to vector<2x8x1xf32>
    %50 = vector.broadcast %49 : vector<2x8x1xf32> to vector<2x8x8xf32>
    %51 = arith.subf %47, %50 : vector<2x8x8xf32>
    %52 = math.exp %51 : vector<2x8x8xf32>
    %cst_29 = arith.constant dense<0.000000e+00> : vector<2x8xf32>
    %53 = vector.multi_reduction <add>, %52, %cst_29 [2] : vector<2x8x8xf32> to vector<2x8xf32>
    %54 = vector.shape_cast %53 : vector<2x8xf32> to vector<2x8x1xf32>
    %55 = tpu.reciprocal %54 {approx = true} : vector<2x8x1xf32> -> vector<2x8x1xf32>
    %56 = vector.broadcast %55 : vector<2x8x1xf32> to vector<2x8x8xf32>
    %57 = arith.mulf %52, %56 : vector<2x8x8xf32>
    %58 = arith.truncf %57 : vector<2x8x8xf32> to vector<2x8x8xbf16>
    "tpu.trace_start"() <{level = 10 : i32, message = "bts,bse->bte"}> : () -> ()
    %cst_30 = arith.constant dense<0.000000e+00> : vector<2x8x32xf32>
    %59 = tpu.matmul %58, %2, %cst_30 {dimension_numbers = #tpu.dot_dimension_numbers<[2], [1], [1], [2], [0, 0, 0, 1, 1, 2], [0], [0]>} : vector<2x8x8xbf16>, vector<2x8x32xbf16>, vector<2x8x32xf32> -> vector<2x8x32xf32>
    "tpu.trace_stop"() : () -> ()
    %c0_31 = arith.constant 0 : index
    %c0_32 = arith.constant 0 : index
    %c0_33 = arith.constant 0 : index
    %60 = vector.load %arg10[%c0_31, %c0_32, %c0_33] : memref<2x32x32xbf16, #tpu.memory_space<vmem>>, vector<1x32x32xbf16>
    %61 = vector.shape_cast %60 : vector<1x32x32xbf16> to vector<32x32xbf16>
    %c0_34 = arith.constant 0 : index
    %c0_35 = arith.constant 0 : index
    %62 = vector.load %arg11[%c0_34, %c0_35] : memref<2x32xf32, #tpu.memory_space<vmem>>, vector<1x32xf32>
    %63 = vector.shape_cast %59 : vector<2x8x32xf32> to vector<16x32xf32>
    %64 = arith.truncf %63 : vector<16x32xf32> to vector<16x32xbf16>
    %cst_36 = arith.constant dense<0.000000e+00> : vector<16x32xf32>
    %65 = tpu.matmul %64, %61, %cst_36 {dimension_numbers = #tpu.dot_dimension_numbers<[1], [0], [0], [1], [0, 0, 1, 1], [], []>} : vector<16x32xbf16>, vector<32x32xbf16>, vector<16x32xf32> -> vector<16x32xf32>
    %66 = vector.broadcast %62 : vector<1x32xf32> to vector<16x32xf32>
    %67 = arith.addf %65, %66 : vector<16x32xf32>
    %68 = vector.shape_cast %67 : vector<16x32xf32> to vector<2x8x32xf32>
    %69 = arith.addf %33, %68 : vector<2x8x32xf32>
    %cst_37 = arith.constant 0.707106769 : f32
    %70 = vector.broadcast %cst_37 : f32 to vector<2x8x32xf32>
    %71 = arith.mulf %69, %70 : vector<2x8x32xf32>
    %72 = arith.addf %71, %10 : vector<2x8x32xf32>
    %cst_38 = arith.constant 0.707106769 : f32
    %73 = vector.broadcast %cst_38 : f32 to vector<2x8x32xf32>
    %74 = arith.mulf %72, %73 : vector<2x8x32xf32>
    %75 = tpu.concatenate %11, %74 in 1 : vector<2x2x32xf32>, vector<2x8x32xf32> -> vector<2x10x32xf32>
    %76 = vector.extract_strided_slice %75 {offsets = [0, 0, 0], sizes = [2, 8, 32], strides = [1, 1, 1]} : vector<2x10x32xf32> to vector<2x8x32xf32>
    %77 = vector.extract_strided_slice %75 {offsets = [0, 1, 0], sizes = [2, 8, 32], strides = [1, 1, 1]} : vector<2x10x32xf32> to vector<2x8x32xf32>
    %78 = vector.extract_strided_slice %75 {offsets = [0, 2, 0], sizes = [2, 8, 32], strides = [1, 1, 1]} : vector<2x10x32xf32> to vector<2x8x32xf32>
    %79 = tpu.concatenate %76, %77, %78 in 2 : vector<2x8x32xf32>, vector<2x8x32xf32>, vector<2x8x32xf32> -> vector<2x8x96xf32>
    %c1 = arith.constant 1 : index
    %c0_39 = arith.constant 0 : index
    %c0_40 = arith.constant 0 : index
    %80 = vector.load %arg6[%c1, %c0_39, %c0_40] : memref<2x96x64xbf16, #tpu.memory_space<vmem>>, vector<1x96x64xbf16>
    %81 = vector.shape_cast %80 : vector<1x96x64xbf16> to vector<96x64xbf16>
    %c1_41 = arith.constant 1 : index
    %c0_42 = arith.constant 0 : index
    %82 = vector.load %arg7[%c1_41, %c0_42] : memref<2x64xf32, #tpu.memory_space<vmem>>, vector<1x64xf32>
    %83 = vector.shape_cast %79 : vector<2x8x96xf32> to vector<16x96xf32>
    %84 = arith.truncf %83 : vector<16x96xf32> to vector<16x96xbf16>
    %cst_43 = arith.constant dense<0.000000e+00> : vector<16x64xf32>
    %85 = tpu.matmul %84, %81, %cst_43 {dimension_numbers = #tpu.dot_dimension_numbers<[1], [0], [0], [1], [0, 0, 1, 1], [], []>} : vector<16x96xbf16>, vector<96x64xbf16>, vector<16x64xf32> -> vector<16x64xf32>
    %86 = vector.broadcast %82 : vector<1x64xf32> to vector<16x64xf32>
    %87 = arith.addf %85, %86 : vector<16x64xf32>
    %88 = vector.shape_cast %87 : vector<16x64xf32> to vector<2x8x64xf32>
    %89 = vector.extract_strided_slice %88 {offsets = [0, 0, 0], sizes = [2, 8, 32], strides = [1, 1, 1]} : vector<2x8x64xf32> to vector<2x8x32xf32>
    %90 = vector.extract_strided_slice %88 {offsets = [0, 0, 32], sizes = [2, 8, 32], strides = [1, 1, 1]} : vector<2x8x64xf32> to vector<2x8x32xf32>
    %91 = arith.negf %90 : vector<2x8x32xf32>
    %92 = math.exp %91 : vector<2x8x32xf32>
    %cst_44 = arith.constant 1.000000e+00 : f32
    %93 = vector.broadcast %cst_44 : f32 to vector<2x8x32xf32>
    %94 = arith.addf %93, %92 : vector<2x8x32xf32>
    %95 = arith.divf %93, %94 : vector<2x8x32xf32>
    %96 = arith.mulf %89, %95 : vector<2x8x32xf32>
    %c1_45 = arith.constant 1 : index
    %c0_46 = arith.constant 0 : index
    %c0_47 = arith.constant 0 : index
    %97 = vector.load %arg8[%c1_45, %c0_46, %c0_47] : memref<2x32x32xbf16, #tpu.memory_space<vmem>>, vector<1x32x32xbf16>
    %98 = vector.shape_cast %97 : vector<1x32x32xbf16> to vector<32x32xbf16>
    %c1_48 = arith.constant 1 : index
    %c0_49 = arith.constant 0 : index
    %99 = vector.load %arg9[%c1_48, %c0_49] : memref<2x32xf32, #tpu.memory_space<vmem>>, vector<1x32xf32>
    %100 = vector.shape_cast %96 : vector<2x8x32xf32> to vector<16x32xf32>
    %101 = arith.truncf %100 : vector<16x32xf32> to vector<16x32xbf16>
    %cst_50 = arith.constant dense<0.000000e+00> : vector<16x32xf32>
    %102 = tpu.matmul %101, %98, %cst_50 {dimension_numbers = #tpu.dot_dimension_numbers<[1], [0], [0], [1], [0, 0, 1, 1], [], []>} : vector<16x32xbf16>, vector<32x32xbf16>, vector<16x32xf32> -> vector<16x32xf32>
    %103 = vector.broadcast %99 : vector<1x32xf32> to vector<16x32xf32>
    %104 = arith.addf %102, %103 : vector<16x32xf32>
    %105 = vector.shape_cast %104 : vector<16x32xf32> to vector<2x8x32xf32>
    %106 = arith.addf %105, %0 : vector<2x8x32xf32>
    %cst_51 = arith.constant 0.707106769 : f32
    %107 = vector.broadcast %cst_51 : f32 to vector<2x8x32xf32>
    %108 = arith.mulf %106, %107 : vector<2x8x32xf32>
    %109 = arith.truncf %108 : vector<2x8x32xf32> to vector<2x8x32xbf16>
    "tpu.trace_start"() <{level = 10 : i32, message = "bte,bes->bts"}> : () -> ()
    %cst_52 = arith.constant dense<0.000000e+00> : vector<2x8x8xf32>
    %110 = tpu.matmul %109, %1, %cst_52 {dimension_numbers = #tpu.dot_dimension_numbers<[2], [1], [1], [2], [0, 0, 0, 1, 1, 2], [0], [0]>} : vector<2x8x32xbf16>, vector<2x32x8xbf16>, vector<2x8x8xf32> -> vector<2x8x8xf32>
    "tpu.trace_stop"() : () -> ()
    %cst_53 = arith.constant dense<0xFF800000> : vector<2x8xf32>
    %111 = vector.multi_reduction <maximumf>, %110, %cst_53 [2] : vector<2x8x8xf32> to vector<2x8xf32>
    %112 = vector.shape_cast %111 : vector<2x8xf32> to vector<2x8x1xf32>
    %113 = vector.broadcast %112 : vector<2x8x1xf32> to vector<2x8x8xf32>
    %114 = arith.subf %110, %113 : vector<2x8x8xf32>
    %115 = math.exp %114 : vector<2x8x8xf32>
    %cst_54 = arith.constant dense<0.000000e+00> : vector<2x8xf32>
    %116 = vector.multi_reduction <add>, %115, %cst_54 [2] : vector<2x8x8xf32> to vector<2x8xf32>
    %117 = vector.shape_cast %116 : vector<2x8xf32> to vector<2x8x1xf32>
    %118 = tpu.reciprocal %117 {approx = true} : vector<2x8x1xf32> -> vector<2x8x1xf32>
    %119 = vector.broadcast %118 : vector<2x8x1xf32> to vector<2x8x8xf32>
    %120 = arith.mulf %115, %119 : vector<2x8x8xf32>
    %121 = arith.truncf %120 : vector<2x8x8xf32> to vector<2x8x8xbf16>
    "tpu.trace_start"() <{level = 10 : i32, message = "bts,bse->bte"}> : () -> ()
    %cst_55 = arith.constant dense<0.000000e+00> : vector<2x8x32xf32>
    %122 = tpu.matmul %121, %2, %cst_55 {dimension_numbers = #tpu.dot_dimension_numbers<[2], [1], [1], [2], [0, 0, 0, 1, 1, 2], [0], [0]>} : vector<2x8x8xbf16>, vector<2x8x32xbf16>, vector<2x8x32xf32> -> vector<2x8x32xf32>
    "tpu.trace_stop"() : () -> ()
    %c1_56 = arith.constant 1 : index
    %c0_57 = arith.constant 0 : index
    %c0_58 = arith.constant 0 : index
    %123 = vector.load %arg10[%c1_56, %c0_57, %c0_58] : memref<2x32x32xbf16, #tpu.memory_space<vmem>>, vector<1x32x32xbf16>
    %124 = vector.shape_cast %123 : vector<1x32x32xbf16> to vector<32x32xbf16>
    %c1_59 = arith.constant 1 : index
    %c0_60 = arith.constant 0 : index
    %125 = vector.load %arg11[%c1_59, %c0_60] : memref<2x32xf32, #tpu.memory_space<vmem>>, vector<1x32xf32>
    %126 = vector.shape_cast %122 : vector<2x8x32xf32> to vector<16x32xf32>
    %127 = arith.truncf %126 : vector<16x32xf32> to vector<16x32xbf16>
    %cst_61 = arith.constant dense<0.000000e+00> : vector<16x32xf32>
    %128 = tpu.matmul %127, %124, %cst_61 {dimension_numbers = #tpu.dot_dimension_numbers<[1], [0], [0], [1], [0, 0, 1, 1], [], []>} : vector<16x32xbf16>, vector<32x32xbf16>, vector<16x32xf32> -> vector<16x32xf32>
    %129 = vector.broadcast %125 : vector<1x32xf32> to vector<16x32xf32>
    %130 = arith.addf %128, %129 : vector<16x32xf32>
    %131 = vector.shape_cast %130 : vector<16x32xf32> to vector<2x8x32xf32>
    %132 = arith.addf %96, %131 : vector<2x8x32xf32>
    %cst_62 = arith.constant 0.707106769 : f32
    %133 = vector.broadcast %cst_62 : f32 to vector<2x8x32xf32>
    %134 = arith.mulf %132, %133 : vector<2x8x32xf32>
    %135 = arith.addf %134, %74 : vector<2x8x32xf32>
    %cst_63 = arith.constant 0.707106769 : f32
    %136 = vector.broadcast %cst_63 : f32 to vector<2x8x32xf32>
    %137 = arith.mulf %135, %136 : vector<2x8x32xf32>
    %c0_64 = arith.constant 0 : index
    %c0_65 = arith.constant 0 : index
    %138 = vector.load %arg12[%c0_64, %c0_65] : memref<32x32xbf16, #tpu.memory_space<vmem>>, vector<32x32xbf16>
    %c0_66 = arith.constant 0 : index
    %c0_67 = arith.constant 0 : index
    %139 = vector.load %arg13[%c0_66, %c0_67] : memref<1x32xf32, #tpu.memory_space<vmem>>, vector<1x32xf32>
    %140 = vector.shape_cast %137 : vector<2x8x32xf32> to vector<16x32xf32>
    %141 = arith.truncf %140 : vector<16x32xf32> to vector<16x32xbf16>
    %cst_68 = arith.constant dense<0.000000e+00> : vector<16x32xf32>
    %142 = tpu.matmul %141, %138, %cst_68 {dimension_numbers = #tpu.dot_dimension_numbers<[1], [0], [0], [1], [0, 0, 1, 1], [], []>} : vector<16x32xbf16>, vector<32x32xbf16>, vector<16x32xf32> -> vector<16x32xf32>
    %143 = vector.broadcast %139 : vector<1x32xf32> to vector<16x32xf32>
    %144 = arith.addf %142, %143 : vector<16x32xf32>
    %145 = vector.shape_cast %144 : vector<16x32xf32> to vector<2x8x32xf32>
    %c0_69 = arith.constant 0 : index
    %c0_70 = arith.constant 0 : index
    %146 = vector.load %arg14[%c0_69, %c0_70] : memref<32x128xbf16, #tpu.memory_space<vmem>>, vector<32x128xbf16>
    %c0_71 = arith.constant 0 : index
    %c0_72 = arith.constant 0 : index
    %147 = vector.load %arg15[%c0_71, %c0_72] : memref<1x128xf32, #tpu.memory_space<vmem>>, vector<1x128xf32>
    %148 = vector.shape_cast %145 : vector<2x8x32xf32> to vector<16x32xf32>
    %149 = arith.truncf %148 : vector<16x32xf32> to vector<16x32xbf16>
    %cst_73 = arith.constant dense<0.000000e+00> : vector<16x128xf32>
    %150 = tpu.matmul %149, %146, %cst_73 {dimension_numbers = #tpu.dot_dimension_numbers<[1], [0], [0], [1], [0, 0, 1, 1], [], []>} : vector<16x32xbf16>, vector<32x128xbf16>, vector<16x128xf32> -> vector<16x128xf32>
    %151 = vector.broadcast %147 : vector<1x128xf32> to vector<16x128xf32>
    %152 = arith.addf %150, %151 : vector<16x128xf32>
    %153 = vector.shape_cast %152 : vector<16x128xf32> to vector<2x8x128xf32>
    %c0_74 = arith.constant 0 : index
    %c0_75 = arith.constant 0 : index
    %c0_76 = arith.constant 0 : index
    %154 = vector.load %arg16[%c0_74, %c0_75, %c0_76] : memref<2x8x128xf32, #tpu.memory_space<vmem>>, vector<2x8x128xf32>
    tpu.vector_store %arg16[%c0_74, %c0_75, %c0_76], %153 {strides = array<i32>} : memref<2x8x128xf32, #tpu.memory_space<vmem>>, vector<2x8x128xf32>,
    %c0_77 = arith.constant 0 : index
    %c0_78 = arith.constant 0 : index
    %c0_79 = arith.constant 0 : index
    %155 = vector.load %arg17[%c0_77, %c0_78, %c0_79] : memref<2x8x8xf32, #tpu.memory_space<vmem>>, vector<2x8x8xf32>
    tpu.vector_store %arg17[%c0_77, %c0_78, %c0_79], %120 {strides = array<i32>} : memref<2x8x8xf32, #tpu.memory_space<vmem>>, vector<2x8x8xf32>,
    return
  }
  func.func @transform_0(%arg0: i32) -> (i32, i32, i32) {
    %c0_i32 = arith.constant 0 : i32
    %c0_i32_0 = arith.constant 0 : i32
    %c0_i32_1 = arith.constant 0 : i32
    %c0_i32_2 = arith.constant 0 : i32
    return %c0_i32, %c0_i32_0, %c0_i32_1 : i32, i32, i32
  }
  func.func @transform_1(%arg0: i32) -> (i32, i32, i32) {
    %c0_i32 = arith.constant 0 : i32
    %c0_i32_0 = arith.constant 0 : i32
    %c0_i32_1 = arith.constant 0 : i32
    %c0_i32_2 = arith.constant 0 : i32
    return %c0_i32, %c0_i32_0, %c0_i32_1 : i32, i32, i32
  }
  func.func @transform_2(%arg0: i32) -> (i32, i32, i32) {
    %c0_i32 = arith.constant 0 : i32
    %c0_i32_0 = arith.constant 0 : i32
    %c0_i32_1 = arith.constant 0 : i32
    %c0_i32_2 = arith.constant 0 : i32
    return %c0_i32, %c0_i32_0, %c0_i32_1 : i32, i32, i32
  }
  func.func @transform_3(%arg0: i32) -> (i32, i32) {
    %c0_i32 = arith.constant 0 : i32
    %c0_i32_0 = arith.constant 0 : i32
    %c0_i32_1 = arith.constant 0 : i32
    return %c0_i32, %c0_i32_0 : i32, i32
  }
  func.func @transform_4(%arg0: i32) -> (i32, i32) {
    %c0_i32 = arith.constant 0 : i32
    %c0_i32_0 = arith.constant 0 : i32
    %c0_i32_1 = arith.constant 0 : i32
    return %c0_i32, %c0_i32_0 : i32, i32
  }
  func.func @transform_5(%arg0: i32) -> (i32, i32, i32) {
    %c0_i32 = arith.constant 0 : i32
    %c0_i32_0 = arith.constant 0 : i32
    %c0_i32_1 = arith.constant 0 : i32
    %c0_i32_2 = arith.constant 0 : i32
    return %c0_i32, %c0_i32_0, %c0_i32_1 : i32, i32, i32
  }
  func.func @transform_6(%arg0: i32) -> (i32, i32) {
    %c0_i32 = arith.constant 0 : i32
    %c0_i32_0 = arith.constant 0 : i32
    %c0_i32_1 = arith.constant 0 : i32
    return %c0_i32, %c0_i32_0 : i32, i32
  }
  func.func @transform_7(%arg0: i32) -> (i32, i32, i32) {
    %c0_i32 = arith.constant 0 : i32
    %c0_i32_0 = arith.constant 0 : i32
    %c0_i32_1 = arith.constant 0 : i32
    %c0_i32_2 = arith.constant 0 : i32
    return %c0_i32, %c0_i32_0, %c0_i32_1 : i32, i32, i32
  }
  func.func @transform_8(%arg0: i32) -> (i32, i32) {
    %c0_i32 = arith.constant 0 : i32
    %c0_i32_0 = arith.constant 0 : i32
    %c0_i32_1 = arith.constant 0 : i32
    return %c0_i32, %c0_i32_0 : i32, i32
  }
  func.func @transform_9(%arg0: i32) -> (i32, i32, i32) {
    %c0_i32 = arith.constant 0 : i32
    %c0_i32_0 = arith.constant 0 : i32
    %c0_i32_1 = arith.constant 0 : i32
    %c0_i32_2 = arith.constant 0 : i32
    return %c0_i32, %c0_i32_0, %c0_i32_1 : i32, i32, i32
  }
  func.func @transform_10(%arg0: i32) -> (i32, i32) {
    %c0_i32 = arith.constant 0 : i32
    %c0_i32_0 = arith.constant 0 : i32
    %c0_i32_1 = arith.constant 0 : i32
    return %c0_i32, %c0_i32_0 : i32, i32
  }
  func.func @transform_11(%arg0: i32) -> (i32, i32) {
    %c0_i32 = arith.constant 0 : i32
    %c0_i32_0 = arith.constant 0 : i32
    %c0_i32_1 = arith.constant 0 : i32
    return %c0_i32, %c0_i32_0 : i32, i32
  }
  func.func @transform_12(%arg0: i32) -> (i32, i32) {
    %c0_i32 = arith.constant 0 : i32
    %c0_i32_0 = arith.constant 0 : i32
    %c0_i32_1 = arith.constant 0 : i32
    return %c0_i32, %c0_i32_0 : i32, i32
  }
  func.func @transform_13(%arg0: i32) -> (i32, i32) {
    %c0_i32 = arith.constant 0 : i32
    %c0_i32_0 = arith.constant 0 : i32
    %c0_i32_1 = arith.constant 0 : i32
    return %c0_i32, %c0_i32_0 : i32, i32
  }
  func.func @transform_14(%arg0: i32) -> (i32, i32) {
    %c0_i32 = arith.constant 0 : i32
    %c0_i32_0 = arith.constant 0 : i32
    %c0_i32_1 = arith.constant 0 : i32
    return %c0_i32, %c0_i32_0 : i32, i32
  }
  func.func @transform_15(%arg0: i32) -> (i32, i32, i32) {
    %c0_i32 = arith.constant 0 : i32
    %c0_i32_0 = arith.constant 0 : i32
    %c0_i32_1 = arith.constant 0 : i32
    %c0_i32_2 = arith.constant 0 : i32
    return %c0_i32, %c0_i32_0, %c0_i32_1 : i32, i32, i32
  }
  func.func @transform_16(%arg0: i32) -> (i32, i32, i32) {
    %c0_i32 = arith.constant 0 : i32
    %c0_i32_0 = arith.constant 0 : i32
    %c0_i32_1 = arith.constant 0 : i32
    %c0_i32_2 = arith.constant 0 : i32
    return %c0_i32, %c0_i32_0, %c0_i32_1 : i32, i32, i32
  }
}

</mosaic_0001>

<llo_original>
// kernel: tpu_custom_call.1
$region0: #{tpu_custom_call.1}
  #allocation0 [shape = 'u32[]', space=smem, size = 0x4, offset = 0x4, fixed_abs, tag = 'smem constant byte address 0x4 - core index']
  #allocation1 [shape = 'u32[72,128]{1,0:T(1,128)}', space=vmem, size = 0x9000, scoped, tag = 'internal scratch']
  %s0 = inlined_call_operand.vmem [shape: f32[2,8,32], index: 0, kind: input, shape index: {}]
  %s1 = inlined_call_operand.vmem [shape: bf16[2,32,8], index: 1, kind: input, shape index: {}]
  %s2 = inlined_call_operand.vmem [shape: bf16[2,8,32], index: 2, kind: input, shape index: {}]
  %s3 = inlined_call_operand.vmem [shape: bf16[32,32], index: 3, kind: input, shape index: {}]
  %s4 = inlined_call_operand.vmem [shape: f32[1,32], index: 4, kind: input, shape index: {}]
  %s5 = inlined_call_operand.vmem [shape: bf16[2,96,64], index: 5, kind: input, shape index: {}]
  %s6 = inlined_call_operand.vmem [shape: f32[2,64], index: 6, kind: input, shape index: {}]
  %s7 = inlined_call_operand.vmem [shape: bf16[2,32,32], index: 7, kind: input, shape index: {}]
  %s8 = inlined_call_operand.vmem [shape: f32[2,32], index: 8, kind: input, shape index: {}]
  %s9 = inlined_call_operand.vmem [shape: bf16[2,32,32], index: 9, kind: input, shape index: {}]
  %s10 = inlined_call_operand.vmem [shape: f32[2,32], index: 10, kind: input, shape index: {}]
  %s11 = inlined_call_operand.vmem [shape: bf16[32,32], index: 11, kind: input, shape index: {}]
  %s12 = inlined_call_operand.vmem [shape: f32[1,32], index: 12, kind: input, shape index: {}]
  %s13 = inlined_call_operand.vmem [shape: bf16[32,128], index: 13, kind: input, shape index: {}]
  %s14 = inlined_call_operand.vmem [shape: f32[1,128], index: 14, kind: input, shape index: {}]
  %s15 = inlined_call_operand.hbm [shape: f32[2,8,128], index: 15, kind: output, shape index: {0}]
  %s16 = inlined_call_operand.hbm [shape: f32[2,8,8], index: 16, kind: output, shape index: {1}]
  %17 = xla_tuple %s15, %s16
  %s18 = sld [smem:[#allocation0]]
  $region78: #{tpu_custom_call.1} parent=0
    _
  %s20 = ssub.s32 1, %s18
  %s21 = scalar_select 0, %s20, %s18
  $region1: #{tpu_custom_call.1} parent=0
    #allocation2 [shape = 'u8[8192]{0}', space=vmem, size = 0x2000, scoped, tag = 'output window, operand 0, single buffered']
    #allocation3 [shape = 's32[1]{0}', space=sflag, size = 0x4, scoped, tag = 'scoped memory for tpu_custom_call.1']
    #allocation4 [shape = 'u8[8192]{0}', space=vmem, size = 0x2000, scoped, tag = 'output window, operand 1, single buffered']
    #allocation5 [shape = 's32[1]{0}', space=sflag, size = 0x4, scoped, tag = 'scoped memory for tpu_custom_call.1']
    %22 = vsyncpa [#allocation3], 0
    %23 = vsyncpa [#allocation5], 0
    // Predicated region
    $region2: #{tpu_custom_call.1} parent=1 // pred_check
      _
    $region3: #{tpu_custom_call.1} parent=1 // pred_check_branch
      %25 = sbr.rel (0) target = $region5
    $region4: #{tpu_custom_call.1} parent=1 // pred_region
      _
    $region5: #{tpu_custom_call.1} parent=1 // pred_fallthru
      _
    // Predicated region
    $region6: #{tpu_custom_call.1} parent=1 // pred_check
      _
    $region7: #{tpu_custom_call.1} parent=1 // pred_check_branch
      %27 = sbr.rel (0) target = $region9
    $region8: #{tpu_custom_call.1} parent=1 // pred_region
      _
    $region9: #{tpu_custom_call.1} parent=1 // pred_fallthru
      _
    // Predicated region
    $region10: #{tpu_custom_call.1} parent=1 // pred_check
      _
    $region11: #{tpu_custom_call.1} parent=1 // pred_check_branch
      %29 = sbr.rel (0) target = $region13
    $region12: #{tpu_custom_call.1} parent=1 // pred_region
      _
    $region13: #{tpu_custom_call.1} parent=1 // pred_fallthru
      _
    // Predicated region
    $region14: #{tpu_custom_call.1} parent=1 // pred_check
      _
    $region15: #{tpu_custom_call.1} parent=1 // pred_check_branch
      %31 = sbr.rel (0) target = $region17
    $region16: #{tpu_custom_call.1} parent=1 // pred_region
      _
    $region17: #{tpu_custom_call.1} parent=1 // pred_fallthru
      _
    // Predicated region
    $region18: #{tpu_custom_call.1} parent=1 // pred_check
      _
    $region19: #{tpu_custom_call.1} parent=1 // pred_check_branch
      %33 = sbr.rel (0) target = $region21
    $region20: #{tpu_custom_call.1} parent=1 // pred_region
      _
    $region21: #{tpu_custom_call.1} parent=1 // pred_fallthru
      _
    // Predicated region
    $region22: #{tpu_custom_call.1} parent=1 // pred_check
      _
    $region23: #{tpu_custom_call.1} parent=1 // pred_check_branch
      %35 = sbr.rel (0) target = $region25
    $region24: #{tpu_custom_call.1} parent=1 // pred_region
      _
    $region25: #{tpu_custom_call.1} parent=1 // pred_fallthru
      _
    // Predicated region
    $region26: #{tpu_custom_call.1} parent=1 // pred_check
      _
    $region27: #{tpu_custom_call.1} parent=1 // pred_check_branch
      %37 = sbr.rel (0) target = $region29
    $region28: #{tpu_custom_call.1} parent=1 // pred_region
      _
    $region29: #{tpu_custom_call.1} parent=1 // pred_fallthru
      _
    // Predicated region
    $region30: #{tpu_custom_call.1} parent=1 // pred_check
      _
    $region31: #{tpu_custom_call.1} parent=1 // pred_check_branch
      %39 = sbr.rel (0) target = $region33
    $region32: #{tpu_custom_call.1} parent=1 // pred_region
      _
    $region33: #{tpu_custom_call.1} parent=1 // pred_fallthru
      _
    // Predicated region
    $region34: #{tpu_custom_call.1} parent=1 // pred_check
      _
    $region35: #{tpu_custom_call.1} parent=1 // pred_check_branch
      %41 = sbr.rel (0) target = $region37
    $region36: #{tpu_custom_call.1} parent=1 // pred_region
      _
    $region37: #{tpu_custom_call.1} parent=1 // pred_fallthru
      _
    // Predicated region
    $region38: #{tpu_custom_call.1} parent=1 // pred_check
      _
    $region39: #{tpu_custom_call.1} parent=1 // pred_check_branch
      %43 = sbr.rel (0) target = $region41
    $region40: #{tpu_custom_call.1} parent=1 // pred_region
      _
    $region41: #{tpu_custom_call.1} parent=1 // pred_fallthru
      _
    // Predicated region
    $region42: #{tpu_custom_call.1} parent=1 // pred_check
      _
    $region43: #{tpu_custom_call.1} parent=1 // pred_check_branch
      %45 = sbr.rel (0) target = $region45
    $region44: #{tpu_custom_call.1} parent=1 // pred_region
      _
    $region45: #{tpu_custom_call.1} parent=1 // pred_fallthru
      _
    // Predicated region
    $region46: #{tpu_custom_call.1} parent=1 // pred_check
      _
    $region47: #{tpu_custom_call.1} parent=1 // pred_check_branch
      %47 = sbr.rel (0) target = $region49
    $region48: #{tpu_custom_call.1} parent=1 // pred_region
      _
    $region49: #{tpu_custom_call.1} parent=1 // pred_fallthru
      _
    // Predicated region
    $region50: #{tpu_custom_call.1} parent=1 // pred_check
      _
    $region51: #{tpu_custom_call.1} parent=1 // pred_check_branch
      %49 = sbr.rel (0) target = $region53
    $region52: #{tpu_custom_call.1} parent=1 // pred_region
      _
    $region53: #{tpu_custom_call.1} parent=1 // pred_fallthru
      _
    // Predicated region
    $region54: #{tpu_custom_call.1} parent=1 // pred_check
      _
    $region55: #{tpu_custom_call.1} parent=1 // pred_check_branch
      %51 = sbr.rel (0) target = $region57
    $region56: #{tpu_custom_call.1} parent=1 // pred_region
      _
    $region57: #{tpu_custom_call.1} parent=1 // pred_fallthru
      _
    // Predicated region
    $region58: #{tpu_custom_call.1} parent=1 // pred_check
      _
    $region59: #{tpu_custom_call.1} parent=1 // pred_check_branch
      %53 = sbr.rel (0) target = $region61
    $region60: #{tpu_custom_call.1} parent=1 // pred_region
      _
    $region61: #{tpu_custom_call.1} parent=1 // pred_fallthru
      _
    %v55 = vld [vmem:[%s0] sm:$0xff]
    %v56 = vld [vmem:[%s0 + $0x8] sm:$0xff]
    %v57 = vld [vmem:[%s1] sm:$0xf]
    %v58 = vld [vmem:[%s1 + $0x4] sm:$0xf]
    %v59 = vld [vmem:[%s1 + $0x8] sm:$0xf]
    %v60 = vld [vmem:[%s1 + $0xc] sm:$0xf]
    %v61 = vld [vmem:[%s1 + $0x10] sm:$0xf]
    %v62 = vld [vmem:[%s1 + $0x14] sm:$0xf]
    %v63 = vld [vmem:[%s1 + $0x18] sm:$0xf]
    %v64 = vld [vmem:[%s1 + $0x1c] sm:$0xf]
    %v65 = vld [vmem:[%s2] sm:$0xf]
    %v66 = vld [vmem:[%s2 + $0x4] sm:$0xf]
    %v67 = vld [vmem:[%s3] sm:$0xf]
    %v68 = vld [vmem:[%s3 + $0x4] sm:$0xf]
    %v69 = vld [vmem:[%s3 + $0x8] sm:$0xf]
    %v70 = vld [vmem:[%s3 + $0xc] sm:$0xf]
    %v71 = vld [vmem:[%s4] sm:$0x1]
    %v72 = vpack.c.bf16 %v56, %v55
    %v74 = vperm.slane %v71, 0
    %v80 = vunpack.c.l.b16 %v67
    %v81 = vunpack.c.l.b16 %v68
    %v82 = vunpack.c.l.b16 %v69
    %v83 = vunpack.c.l.b16 %v70
    %v84 = vpack.c.b16 %v81, %v80
    %v85 = vpack.c.b16 %v83, %v82
    %vm88 = vcmask 261120
    %v90 = vsel %vm88, %v72, 0
    %92 = vmatpush.bf16.msra.mxu0 0
    %93 = vmatpush.bf16.msra.mxu0 0
    %94 = vmatpush.bf16.msra.mxu0 0
    %95 = vmatpush.bf16.msra.mxu0 0
    %96 = vmatpush.bf16.msra.mxu0 0
    %97 = vmatpush.bf16.msra.mxu0 0
    %98 = vmatpush.bf16.msra.mxu0 %v85
    %99 = vmatpush.bf16.msra.mxu0 %v84
    %100 = vmatmul.bf16.gmra.mxu0 %v90
    %v101 = vpop.f32.mrf.mxu0
    %v102 = vadd.f32 %v74, %v101
    %v103 = vpop.f32.mrf.mxu0
    %v104 = vadd.f32 %v74, %v103
    %105 = vdwg.mxu0
    %v108 = vrot.slane %v102, 6
    %v109 = vrot.slane %v104, 6
    %vm112 = vcmask 1041408
    %v113 = vsel %vm112, 1.0, %v108
    %v114 = vsel %vm112, 1.0, %v109
    %vm117 = vcmask 1046528
    %v118 = vrot.slane %v113, 1
    %v119 = vrot.slane %v108, 1
    %v120 = vsel %vm117, %v118, %v119
    %v121 = vrot.slane %v114, 1
    %v122 = vrot.slane %v109, 1
    %v123 = vsel %vm117, %v121, %v122
    %124 = vrot.lane.b32.xlu0 %v120, 32
    %v125 = vpop.permute.xlu0 %124
    %126 = vrot.lane.b32.xlu0 %v123, 32
    %v127 = vpop.permute.xlu0 %126
    %vm130 = vcmask 1045504
    %v131 = vrot.slane %v113, 2
    %v132 = vrot.slane %v108, 2
    %v133 = vsel %vm130, %v131, %v132
    %v134 = vrot.slane %v114, 2
    %v135 = vrot.slane %v109, 2
    %v136 = vsel %vm130, %v134, %v135
    %137 = vrot.lane.b32.xlu0 %v133, 64
    %v138 = vpop.permute.xlu0 %137
    %139 = vrot.lane.b32.xlu0 %v136, 64
    %v140 = vpop.permute.xlu0 %139
    %v143 = vsel %vm88, %v113, %v125
    %v144 = vsel %vm88, %v114, %v127
    %vm145 = vcmask 523264
    %v146 = vsel %vm145, %v143, %v138
    %v147 = vsel %vm145, %v144, %v140
    %v148 = vld [vmem:[%s5] sm:$0xf]
    %v149 = vld [vmem:[%s5 + $0x4] sm:$0xf]
    %v150 = vld [vmem:[%s5 + $0x8] sm:$0xf]
    %v151 = vld [vmem:[%s5 + $0xc] sm:$0xf]
    %v152 = vld [vmem:[%s5 + $0x10] sm:$0xf]
    %v153 = vld [vmem:[%s5 + $0x14] sm:$0xf]
    %v154 = vld [vmem:[%s5 + $0x18] sm:$0xf]
    %v155 = vld [vmem:[%s5 + $0x1c] sm:$0xf]
    %v156 = vld [vmem:[%s5 + $0x20] sm:$0xf]
    %v157 = vld [vmem:[%s5 + $0x24] sm:$0xf]
    %v158 = vld [vmem:[%s5 + $0x28] sm:$0xf]
    %v159 = vld [vmem:[%s5 + $0x2c] sm:$0xf]
    %v160 = vld [vmem:[%s6] sm:$0x1]
    %v161 = vpack.c.bf16 %v147, %v146
    %v162 = vperm.slane %v160, 0
    %v175 = vunpack.c.l.b16 %v148
    %v176 = vunpack.c.l.b16 %v149
    %v177 = vunpack.c.l.b16 %v150
    %v178 = vunpack.c.l.b16 %v151
    %v179 = vunpack.c.l.b16 %v152
    %v180 = vunpack.c.l.b16 %v153
    %v181 = vunpack.c.l.b16 %v154
    %v182 = vunpack.c.l.b16 %v155
    %v183 = vunpack.c.l.b16 %v156
    %v184 = vunpack.c.l.b16 %v157
    %v185 = vunpack.c.l.b16 %v158
    %v186 = vunpack.c.l.b16 %v159
    %v187 = vpack.c.b16 %v176, %v175
    %v188 = vpack.c.b16 %v178, %v177
    %v189 = vpack.c.b16 %v180, %v179
    %v190 = vpack.c.b16 %v182, %v181
    %v191 = vpack.c.b16 %v184, %v183
    %v192 = vpack.c.b16 %v186, %v185
    %vm199 = vcmask 785408
    %v201 = vsel %vm199, %v161, 0
    %203 = vmatpush.bf16.msra.mxu0 0
    %204 = vmatpush.bf16.msra.mxu0 0
    %205 = vmatpush.bf16.msra.mxu0 %v192
    %206 = vmatpush.bf16.msra.mxu0 %v191
    %207 = vmatpush.bf16.msra.mxu0 %v190
    %208 = vmatpush.bf16.msra.mxu0 %v189
    %209 = vmatpush.bf16.msra.mxu0 %v188
    %210 = vmatpush.bf16.msra.mxu0 %v187
    %211 = vmatmul.bf16.gmra.mxu0 %v201
    %v212 = vpop.f32.mrf.mxu0
    %v213 = vadd.f32 %v162, %v212
    %v214 = vpop.f32.mrf.mxu0
    %v215 = vadd.f32 %v162, %v214
    %216 = vdwg.mxu0
    %v217 = vxor.u32 %v213, 2147483648
    %v218 = vxor.u32 %v215, 2147483648
    %v219 = vmul.f32 %v217, 1.442695
    %v220 = vpow.pop %v219
    %v221 = vmul.f32 %v218, 1.442695
    %v222 = vpow.pop %v221
    %v223 = vadd.f32 %v220, 1.0
    %v224 = vadd.f32 %v222, 1.0
    %v225 = vrcp.pop %v223
    %v226 = vmul.f32 %v223, %v225
    %v227 = vsub.f32 1.0, %v226
    %v228 = vmul.f32 %v225, %v227
    %v229 = vadd.f32 %v225, %v228
    %vm230 = vweird.f32 %v223
    %vm231 = vweird.f32 %v225
    %vm232 = vmor %vm230, %vm231
    %v233 = vsel %vm232, %v225, %v229
    %v234 = vand.u32 2147483647, %v223
    %vm235 = vcmp.eq.f32.partialorder %v234, 8.507059e+37
    %v236 = vand.u32 %v223, 2147483648
    %v237 = vor.u32 1.1754944e-38, %v236
    %v238 = vsel %vm235, %v237, %v233
    %v239 = vmul.f32 1.0, %v238
    %v240 = vrcp.pop %v224
    %v241 = vmul.f32 %v224, %v240
    %v242 = vsub.f32 1.0, %v241
    %v243 = vmul.f32 %v240, %v242
    %v244 = vadd.f32 %v240, %v243
    %vm245 = vweird.f32 %v224
    %vm246 = vweird.f32 %v240
    %vm247 = vmor %vm245, %vm246
    %v248 = vsel %vm247, %v240, %v244
    %v249 = vand.u32 2147483647, %v224
    %vm250 = vcmp.eq.f32.partialorder %v249, 8.507059e+37
    %v251 = vand.u32 %v224, 2147483648
    %v252 = vor.u32 1.1754944e-38, %v251
    %v253 = vsel %vm250, %v252, %v248
    %v254 = vmul.f32 1.0, %v253
    %257 = vrot.lane.b32.xlu0 %v239, 96
    %v258 = vpop.permute.xlu0 %257
    %259 = vrot.lane.b32.xlu0 %v254, 96
    %v260 = vpop.permute.xlu0 %259
    %v263 = vmul.f32 %v213, %v258
    %v264 = vmul.f32 %v215, %v260
    %v265 = vld [vmem:[%s7] sm:$0xf]
    %v266 = vld [vmem:[%s7 + $0x4] sm:$0xf]
    %v267 = vld [vmem:[%s7 + $0x8] sm:$0xf]
    %v268 = vld [vmem:[%s7 + $0xc] sm:$0xf]
    %v269 = vld [vmem:[%s8] sm:$0x1]
    %v270 = vpack.c.bf16 %v264, %v263
    %v271 = vperm.slane %v269, 0
    %v276 = vunpack.c.l.b16 %v265
    %v277 = vunpack.c.l.b16 %v266
    %v278 = vunpack.c.l.b16 %v267
    %v279 = vunpack.c.l.b16 %v268
    %v280 = vpack.c.b16 %v277, %v276
    %v281 = vpack.c.b16 %v279, %v278
    %v285 = vsel %vm88, %v270, 0
    %287 = vmatpush.bf16.msra.mxu0 0
    %288 = vmatpush.bf16.msra.mxu0 0
    %289 = vmatpush.bf16.msra.mxu0 0
    %290 = vmatpush.bf16.msra.mxu0 0
    %291 = vmatpush.bf16.msra.mxu0 0
    %292 = vmatpush.bf16.msra.mxu0 0
    %293 = vmatpush.bf16.msra.mxu0 %v281
    %294 = vmatpush.bf16.msra.mxu0 %v280
    %295 = vmatmul.bf16.gmra.mxu0 %v285
    %v296 = vpop.f32.mrf.mxu0
    %v297 = vadd.f32 %v271, %v296
    %v298 = vpop.f32.mrf.mxu0
    %v299 = vadd.f32 %v271, %v298
    %300 = vdwg.mxu0
    %v301 = vadd.f32 %v297, %v55
    %v302 = vadd.f32 %v299, %v56
    %v303 = vmul.f32 %v301, 0.70710677
    %v304 = vmul.f32 %v302, 0.70710677
    %v305 = vpack.c.bf16 %v303, %v303
    %v306 = vpack.c.bf16 %v304, %v304
    %v311 = vunpack.c.l.b16 %v57
    %v312 = vunpack.c.l.b16 %v58
    %v313 = vunpack.c.l.b16 %v59
    %v314 = vunpack.c.l.b16 %v60
    %v315 = vpack.c.b16 %v312, %v311
    %v316 = vpack.c.b16 %v314, %v313
    %v320 = vsel %vm88, %v305, 0
    %322 = vmatpush.bf16.msra.mxu0 0
    %323 = vmatpush.bf16.msra.mxu0 0
    %324 = vmatpush.bf16.msra.mxu0 0
    %325 = vmatpush.bf16.msra.mxu0 0
    %326 = vmatpush.bf16.msra.mxu0 0
    %327 = vmatpush.bf16.msra.mxu0 0
    %328 = vmatpush.bf16.msra.mxu0 %v316
    %329 = vmatpush.bf16.msra.mxu0 %v315
    %330 = vmatmul.bf16.gmra.mxu0 %v320
    %v331 = vpop.f32.mrf.mxu0
    %v332 = vadd.f32 0.0, %v331
    %v333 = vpop.f32.mrf.mxu0
    %334 = vdwg.mxu0
    %v339 = vunpack.c.l.b16 %v61
    %v340 = vunpack.c.l.b16 %v62
    %v341 = vunpack.c.l.b16 %v63
    %v342 = vunpack.c.l.b16 %v64
    %v343 = vpack.c.b16 %v340, %v339
    %v344 = vpack.c.b16 %v342, %v341
    %v348 = vsel %vm88, %v306, 0
    %350 = vmatpush.bf16.msra.mxu0 0
    %351 = vmatpush.bf16.msra.mxu0 0
    %352 = vmatpush.bf16.msra.mxu0 0
    %353 = vmatpush.bf16.msra.mxu0 0
    %354 = vmatpush.bf16.msra.mxu0 0
    %355 = vmatpush.bf16.msra.mxu0 0
    %356 = vmatpush.bf16.msra.mxu0 %v344
    %357 = vmatpush.bf16.msra.mxu0 %v343
    %358 = vmatmul.bf16.gmra.mxu0 %v348
    %v359 = vpop.f32.mrf.mxu0
    %v360 = vadd.f32 0.0, %v359
    %v361 = vpop.f32.mrf.mxu0
    %362 = vdwg.mxu0
    %vm363 = vcmask 64512
    %v364 = vsel %vm363, %v332, -inf
    %365 = vmax.xlane.f32.xlu0 %v364
    %v366 = vpop.xlane.xlu0 %365
    %v367 = vsel %vm363, %v360, -inf
    %368 = vmax.xlane.f32.xlu0 %v367
    %v369 = vpop.xlane.xlu0 %368
    %v370 = vsub.f32 %v332, %v366
    %v371 = vsub.f32 %v360, %v369
    %v372 = vmul.f32 %v370, 1.442695
    %v373 = vpow.pop %v372
    %v374 = vmul.f32 %v371, 1.442695
    %v375 = vpow.pop %v374
    %v376 = vsel %vm363, %v373, 0.0
    %377 = vadd.xlane.f32.xlu0 %v376
    %v378 = vpop.xlane.xlu0 %377
    %v379 = vsel %vm363, %v375, 0.0
    %380 = vadd.xlane.f32.xlu0 %v379
    %v381 = vpop.xlane.xlu0 %380
    %v382 = vrcp.pop %v378
    %v383 = vrcp.pop %v381
    %v384 = vmul.f32 %v373, %v382
    %v385 = vmul.f32 %v375, %v383
    %v386 = vpack.c.bf16 %v384, %v384
    %v387 = vpack.c.bf16 %v385, %v385
    %v389 = vsel %vm363, %v386, 0
    %vm391 = vcmask 1043456
    %v393 = vsel %vm391, %v65, 0
    %395 = vmatpush.bf16.msra.mxu0 0
    %396 = vmatpush.bf16.msra.mxu0 0
    %397 = vmatpush.bf16.msra.mxu0 0
    %398 = vmatpush.bf16.msra.mxu0 0
    %399 = vmatpush.bf16.msra.mxu0 0
    %400 = vmatpush.bf16.msra.mxu0 0
    %401 = vmatpush.bf16.msra.mxu0 0
    %402 = vmatpush.bf16.msra.mxu0 %v393
    %403 = vmatmul.bf16.gmra.mxu0 %v389
    %v404 = vpop.f32.mrf.mxu0
    %v405 = vadd.f32 0.0, %v404
    %v406 = vpop.f32.mrf.mxu0
    %407 = vdwg.mxu0
    %v409 = vsel %vm363, %v387, 0
    %v412 = vsel %vm391, %v66, 0
    %414 = vmatpush.bf16.msra.mxu0 0
    %415 = vmatpush.bf16.msra.mxu0 0
    %416 = vmatpush.bf16.msra.mxu0 0
    %417 = vmatpush.bf16.msra.mxu0 0
    %418 = vmatpush.bf16.msra.mxu0 0
    %419 = vmatpush.bf16.msra.mxu0 0
    %420 = vmatpush.bf16.msra.mxu0 0
    %421 = vmatpush.bf16.msra.mxu0 %v412
    %422 = vmatmul.bf16.gmra.mxu0 %v409
    %v423 = vpop.f32.mrf.mxu0
    %v424 = vadd.f32 0.0, %v423
    %v425 = vpop.f32.mrf.mxu0
    %426 = vdwg.mxu0
    %v427 = vld [vmem:[%s9] sm:$0xf]
    %v428 = vld [vmem:[%s9 + $0x4] sm:$0xf]
    %v429 = vld [vmem:[%s9 + $0x8] sm:$0xf]
    %v430 = vld [vmem:[%s9 + $0xc] sm:$0xf]
    %v431 = vld [vmem:[%s10] sm:$0x1]
    %v432 = vpack.c.bf16 %v424, %v405
    %v433 = vperm.slane %v431, 0
    %v438 = vunpack.c.l.b16 %v427
    %v439 = vunpack.c.l.b16 %v428
    %v440 = vunpack.c.l.b16 %v429
    %v441 = vunpack.c.l.b16 %v430
    %v442 = vpack.c.b16 %v439, %v438
    %v443 = vpack.c.b16 %v441, %v440
    %v447 = vsel %vm88, %v432, 0
    %449 = vmatpush.bf16.msra.mxu0 0
    %450 = vmatpush.bf16.msra.mxu0 0
    %451 = vmatpush.bf16.msra.mxu0 0
    %452 = vmatpush.bf16.msra.mxu0 0
    %453 = vmatpush.bf16.msra.mxu0 0
    %454 = vmatpush.bf16.msra.mxu0 0
    %455 = vmatpush.bf16.msra.mxu0 %v443
    %456 = vmatpush.bf16.msra.mxu0 %v442
    %457 = vmatmul.bf16.gmra.mxu0 %v447
    %v458 = vpop.f32.mrf.mxu0
    %v459 = vadd.f32 %v433, %v458
    %v460 = vpop.f32.mrf.mxu0
    %v461 = vadd.f32 %v433, %v460
    %462 = vdwg.mxu0
    %v463 = vadd.f32 %v263, %v459
    %v464 = vadd.f32 %v264, %v461
    %v465 = vmul.f32 %v463, 0.70710677
    %v466 = vmul.f32 %v464, 0.70710677
    %v467 = vadd.f32 %v465, %v102
    %v468 = vadd.f32 %v466, %v104
    %v469 = vmul.f32 %v467, 0.70710677
    %v470 = vmul.f32 %v468, 0.70710677
    %v473 = vrot.slane %v469, 6
    %v474 = vrot.slane %v470, 6
    %v477 = vsel %vm112, 1.0, %v473
    %v478 = vsel %vm112, 1.0, %v474
    %v481 = vrot.slane %v477, 1
    %v482 = vrot.slane %v473, 1
    %v483 = vsel %vm117, %v481, %v482
    %v484 = vrot.slane %v478, 1
    %v485 = vrot.slane %v474, 1
    %v486 = vsel %vm117, %v484, %v485
    %487 = vrot.lane.b32.xlu0 %v483, 32
    %v488 = vpop.permute.xlu0 %487
    %489 = vrot.lane.b32.xlu0 %v486, 32
    %v490 = vpop.permute.xlu0 %489
    %v493 = vrot.slane %v477, 2
    %v494 = vrot.slane %v473, 2
    %v495 = vsel %vm130, %v493, %v494
    %v496 = vrot.slane %v478, 2
    %v497 = vrot.slane %v474, 2
    %v498 = vsel %vm130, %v496, %v497
    %499 = vrot.lane.b32.xlu0 %v495, 64
    %v500 = vpop.permute.xlu0 %499
    %501 = vrot.lane.b32.xlu0 %v498, 64
    %v502 = vpop.permute.xlu0 %501
    %v505 = vsel %vm88, %v477, %v488
    %v506 = vsel %vm88, %v478, %v490
    %v507 = vsel %vm145, %v505, %v500
    %v508 = vsel %vm145, %v506, %v502
    %s509 = scalar_lea.vmem %s5, 48
    %v510 = vld [vmem:[%s509] sm:$0xf]
    %v511 = vld [vmem:[%s509 + $0x4] sm:$0xf]
    %v512 = vld [vmem:[%s509 + $0x8] sm:$0xf]
    %v513 = vld [vmem:[%s509 + $0xc] sm:$0xf]
    %v514 = vld [vmem:[%s509 + $0x10] sm:$0xf]
    %v515 = vld [vmem:[%s509 + $0x14] sm:$0xf]
    %v516 = vld [vmem:[%s509 + $0x18] sm:$0xf]
    %v517 = vld [vmem:[%s509 + $0x1c] sm:$0xf]
    %v518 = vld [vmem:[%s509 + $0x20] sm:$0xf]
    %v519 = vld [vmem:[%s509 + $0x24] sm:$0xf]
    %v520 = vld [vmem:[%s509 + $0x28] sm:$0xf]
    %v521 = vld [vmem:[%s509 + $0x2c] sm:$0xf]
    %v522 = vld [vmem:[%s6 + $0x1] sm:$0x1]
    %v523 = vpack.c.bf16 %v508, %v507
    %v524 = vperm.slane %v522, 0
    %v537 = vunpack.c.l.b16 %v510
    %v538 = vunpack.c.l.b16 %v511
    %v539 = vunpack.c.l.b16 %v512
    %v540 = vunpack.c.l.b16 %v513
    %v541 = vunpack.c.l.b16 %v514
    %v542 = vunpack.c.l.b16 %v515
    %v543 = vunpack.c.l.b16 %v516
    %v544 = vunpack.c.l.b16 %v517
    %v545 = vunpack.c.l.b16 %v518
    %v546 = vunpack.c.l.b16 %v519
    %v547 = vunpack.c.l.b16 %v520
    %v548 = vunpack.c.l.b16 %v521
    %v549 = vpack.c.b16 %v538, %v537
    %v550 = vpack.c.b16 %v540, %v539
    %v551 = vpack.c.b16 %v542, %v541
    %v552 = vpack.c.b16 %v544, %v543
    %v553 = vpack.c.b16 %v546, %v545
    %v554 = vpack.c.b16 %v548, %v547
    %v562 = vsel %vm199, %v523, 0
    %564 = vmatpush.bf16.msra.mxu0 0
    %565 = vmatpush.bf16.msra.mxu0 0
    %566 = vmatpush.bf16.msra.mxu0 %v554
    %567 = vmatpush.bf16.msra.mxu0 %v553
    %568 = vmatpush.bf16.msra.mxu0 %v552
    %569 = vmatpush.bf16.msra.mxu0 %v551
    %570 = vmatpush.bf16.msra.mxu0 %v550
    %571 = vmatpush.bf16.msra.mxu0 %v549
    %572 = vmatmul.bf16.gmra.mxu0 %v562
    %v573 = vpop.f32.mrf.mxu0
    %v574 = vadd.f32 %v524, %v573
    %v575 = vpop.f32.mrf.mxu0
    %v576 = vadd.f32 %v524, %v575
    %577 = vdwg.mxu0
    %v578 = vxor.u32 %v574, 2147483648
    %v579 = vxor.u32 %v576, 2147483648
    %v580 = vmul.f32 %v578, 1.442695
    %v581 = vpow.pop %v580
    %v582 = vmul.f32 %v579, 1.442695
    %v583 = vpow.pop %v582
    %v584 = vadd.f32 %v581, 1.0
    %v585 = vadd.f32 %v583, 1.0
    %v586 = vrcp.pop %v584
    %v587 = vmul.f32 %v584, %v586
    %v588 = vsub.f32 1.0, %v587
    %v589 = vmul.f32 %v586, %v588
    %v590 = vadd.f32 %v586, %v589
    %vm591 = vweird.f32 %v584
    %vm592 = vweird.f32 %v586
    %vm593 = vmor %vm591, %vm592
    %v594 = vsel %vm593, %v586, %v590
    %v595 = vand.u32 2147483647, %v584
    %vm596 = vcmp.eq.f32.partialorder %v595, 8.507059e+37
    %v597 = vand.u32 %v584, 2147483648
    %v598 = vor.u32 1.1754944e-38, %v597
    %v599 = vsel %vm596, %v598, %v594
    %v600 = vmul.f32 1.0, %v599
    %v601 = vrcp.pop %v585
    %v602 = vmul.f32 %v585, %v601
    %v603 = vsub.f32 1.0, %v602
    %v604 = vmul.f32 %v601, %v603
    %v605 = vadd.f32 %v601, %v604
    %vm606 = vweird.f32 %v585
    %vm607 = vweird.f32 %v601
    %vm608 = vmor %vm606, %vm607
    %v609 = vsel %vm608, %v601, %v605
    %v610 = vand.u32 2147483647, %v585
    %vm611 = vcmp.eq.f32.partialorder %v610, 8.507059e+37
    %v612 = vand.u32 %v585, 2147483648
    %v613 = vor.u32 1.1754944e-38, %v612
    %v614 = vsel %vm611, %v613, %v609
    %v615 = vmul.f32 1.0, %v614
    %618 = vrot.lane.b32.xlu0 %v600, 96
    %v619 = vpop.permute.xlu0 %618
    %620 = vrot.lane.b32.xlu0 %v615, 96
    %v621 = vpop.permute.xlu0 %620
    %v624 = vmul.f32 %v574, %v619
    %v625 = vmul.f32 %v576, %v621
    %s626 = scalar_lea.vmem %s7, 16
    %v627 = vld [vmem:[%s626] sm:$0xf]
    %v628 = vld [vmem:[%s626 + $0x4] sm:$0xf]
    %v629 = vld [vmem:[%s626 + $0x8] sm:$0xf]
    %v630 = vld [vmem:[%s626 + $0xc] sm:$0xf]
    %v631 = vld [vmem:[%s8 + $0x1] sm:$0x1]
    %v632 = vpack.c.bf16 %v625, %v624
    %v633 = vperm.slane %v631, 0
    %v638 = vunpack.c.l.b16 %v627
    %v639 = vunpack.c.l.b16 %v628
    %v640 = vunpack.c.l.b16 %v629
    %v641 = vunpack.c.l.b16 %v630
    %v642 = vpack.c.b16 %v639, %v638
    %v643 = vpack.c.b16 %v641, %v640
    %v647 = vsel %vm88, %v632, 0
    %649 = vmatpush.bf16.msra.mxu0 0
    %650 = vmatpush.bf16.msra.mxu0 0
    %651 = vmatpush.bf16.msra.mxu0 0
    %652 = vmatpush.bf16.msra.mxu0 0
    %653 = vmatpush.bf16.msra.mxu0 0
    %654 = vmatpush.bf16.msra.mxu0 0
    %655 = vmatpush.bf16.msra.mxu0 %v643
    %656 = vmatpush.bf16.msra.mxu0 %v642
    %657 = vmatmul.bf16.gmra.mxu0 %v647
    %v658 = vpop.f32.mrf.mxu0
    %v659 = vadd.f32 %v633, %v658
    %v660 = vpop.f32.mrf.mxu0
    %v661 = vadd.f32 %v633, %v660
    %662 = vdwg.mxu0
    %v663 = vadd.f32 %v659, %v55
    %v664 = vadd.f32 %v661, %v56
    %v665 = vmul.f32 %v663, 0.70710677
    %v666 = vmul.f32 %v664, 0.70710677
    %v667 = vpack.c.bf16 %v665, %v665
    %v668 = vpack.c.bf16 %v666, %v666
    %v670 = vsel %vm88, %v667, 0
    %672 = vmatpush.bf16.msra.mxu0 0
    %673 = vmatpush.bf16.msra.mxu0 0
    %674 = vmatpush.bf16.msra.mxu0 0
    %675 = vmatpush.bf16.msra.mxu0 0
    %676 = vmatpush.bf16.msra.mxu0 0
    %677 = vmatpush.bf16.msra.mxu0 0
    %678 = vmatpush.bf16.msra.mxu0 %v316
    %679 = vmatpush.bf16.msra.mxu0 %v315
    %680 = vmatmul.bf16.gmra.mxu0 %v670
    %v681 = vpop.f32.mrf.mxu0
    %v682 = vadd.f32 0.0, %v681
    %v683 = vpop.f32.mrf.mxu0
    %684 = vdwg.mxu0
    %v686 = vsel %vm88, %v668, 0
    %688 = vmatpush.bf16.msra.mxu0 0
    %689 = vmatpush.bf16.msra.mxu0 0
    %690 = vmatpush.bf16.msra.mxu0 0
    %691 = vmatpush.bf16.msra.mxu0 0
    %692 = vmatpush.bf16.msra.mxu0 0
    %693 = vmatpush.bf16.msra.mxu0 0
    %694 = vmatpush.bf16.msra.mxu0 %v344
    %695 = vmatpush.bf16.msra.mxu0 %v343
    %696 = vmatmul.bf16.gmra.mxu0 %v686
    %v697 = vpop.f32.mrf.mxu0
    %v698 = vadd.f32 0.0, %v697
    %v699 = vpop.f32.mrf.mxu0
    %700 = vdwg.mxu0
    %v701 = vsel %vm363, %v682, -inf
    %702 = vmax.xlane.f32.xlu0 %v701
    %v703 = vpop.xlane.xlu0 %702
    %v704 = vsel %vm363, %v698, -inf
    %705 = vmax.xlane.f32.xlu0 %v704
    %v706 = vpop.xlane.xlu0 %705
    %v707 = vsub.f32 %v682, %v703
    %v708 = vsub.f32 %v698, %v706
    %v709 = vmul.f32 %v707, 1.442695
    %v710 = vpow.pop %v709
    %v711 = vmul.f32 %v708, 1.442695
    %v712 = vpow.pop %v711
    %v713 = vsel %vm363, %v710, 0.0
    %714 = vadd.xlane.f32.xlu0 %v713
    %v715 = vpop.xlane.xlu0 %714
    %v716 = vsel %vm363, %v712, 0.0
    %717 = vadd.xlane.f32.xlu0 %v716
    %v718 = vpop.xlane.xlu0 %717
    %v719 = vrcp.pop %v715
    %v720 = vrcp.pop %v718
    %v721 = vmul.f32 %v710, %v719
    %v722 = vmul.f32 %v712, %v720
    %v723 = vpack.c.bf16 %v721, %v721
    %v724 = vpack.c.bf16 %v722, %v722
    %v726 = vsel %vm363, %v723, 0
    %728 = vmatpush.bf16.msra.mxu0 0
    %729 = vmatpush.bf16.msra.mxu0 0
    %730 = vmatpush.bf16.msra.mxu0 0
    %731 = vmatpush.bf16.msra.mxu0 0
    %732 = vmatpush.bf16.msra.mxu0 0
    %733 = vmatpush.bf16.msra.mxu0 0
    %734 = vmatpush.bf16.msra.mxu0 0
    %735 = vmatpush.bf16.msra.mxu0 %v393
    %736 = vmatmul.bf16.gmra.mxu0 %v726
    %v737 = vpop.f32.mrf.mxu0
    %v738 = vadd.f32 0.0, %v737
    %v739 = vpop.f32.mrf.mxu0
    %740 = vdwg.mxu0
    %v742 = vsel %vm363, %v724, 0
    %744 = vmatpush.bf16.msra.mxu0 0
    %745 = vmatpush.bf16.msra.mxu0 0
    %746 = vmatpush.bf16.msra.mxu0 0
    %747 = vmatpush.bf16.msra.mxu0 0
    %748 = vmatpush.bf16.msra.mxu0 0
    %749 = vmatpush.bf16.msra.mxu0 0
    %750 = vmatpush.bf16.msra.mxu0 0
    %751 = vmatpush.bf16.msra.mxu0 %v412
    %752 = vmatmul.bf16.gmra.mxu0 %v742
    %v753 = vpop.f32.mrf.mxu0
    %v754 = vadd.f32 0.0, %v753
    %v755 = vpop.f32.mrf.mxu0
    %756 = vdwg.mxu0
    %s757 = scalar_lea.vmem %s9, 16
    %v758 = vld [vmem:[%s757] sm:$0xf]
    %v759 = vld [vmem:[%s757 + $0x4] sm:$0xf]
    %v760 = vld [vmem:[%s757 + $0x8] sm:$0xf]
    %v761 = vld [vmem:[%s757 + $0xc] sm:$0xf]
    %v762 = vld [vmem:[%s10 + $0x1] sm:$0x1]
    %v763 = vpack.c.bf16 %v754, %v738
    %v764 = vperm.slane %v762, 0
    %v769 = vunpack.c.l.b16 %v758
    %v770 = vunpack.c.l.b16 %v759
    %v771 = vunpack.c.l.b16 %v760
    %v772 = vunpack.c.l.b16 %v761
    %v773 = vpack.c.b16 %v770, %v769
    %v774 = vpack.c.b16 %v772, %v771
    %v778 = vsel %vm88, %v763, 0
    %780 = vmatpush.bf16.msra.mxu0 0
    %781 = vmatpush.bf16.msra.mxu0 0
    %782 = vmatpush.bf16.msra.mxu0 0
    %783 = vmatpush.bf16.msra.mxu0 0
    %784 = vmatpush.bf16.msra.mxu0 0
    %785 = vmatpush.bf16.msra.mxu0 0
    %786 = vmatpush.bf16.msra.mxu0 %v774
    %787 = vmatpush.bf16.msra.mxu0 %v773
    %788 = vmatmul.bf16.gmra.mxu0 %v778
    %v789 = vpop.f32.mrf.mxu0
    %v790 = vadd.f32 %v764, %v789
    %v791 = vpop.f32.mrf.mxu0
    %v792 = vadd.f32 %v764, %v791
    %793 = vdwg.mxu0
    %v794 = vadd.f32 %v624, %v790
    %v795 = vadd.f32 %v625, %v792
    %v796 = vmul.f32 %v794, 0.70710677
    %v797 = vmul.f32 %v795, 0.70710677
    %v798 = vadd.f32 %v796, %v469
    %v799 = vadd.f32 %v797, %v470
    %v800 = vmul.f32 %v798, 0.70710677
    %v801 = vmul.f32 %v799, 0.70710677
    %v802 = vld [vmem:[%s11] sm:$0xf]
    %v803 = vld [vmem:[%s11 + $0x4] sm:$0xf]
    %v804 = vld [vmem:[%s11 + $0x8] sm:$0xf]
    %v805 = vld [vmem:[%s11 + $0xc] sm:$0xf]
    %v806 = vld [vmem:[%s12] sm:$0x1]
    %v807 = vpack.c.bf16 %v801, %v800
    %v809 = vperm.slane %v806, 0
    %v815 = vunpack.c.l.b16 %v802
    %v816 = vunpack.c.l.b16 %v803
    %v817 = vunpack.c.l.b16 %v804
    %v818 = vunpack.c.l.b16 %v805
    %v819 = vpack.c.b16 %v816, %v815
    %v820 = vpack.c.b16 %v818, %v817
    %v824 = vsel %vm88, %v807, 0
    %826 = vmatpush.bf16.msra.mxu0 0
    %827 = vmatpush.bf16.msra.mxu0 0
    %828 = vmatpush.bf16.msra.mxu0 0
    %829 = vmatpush.bf16.msra.mxu0 0
    %830 = vmatpush.bf16.msra.mxu0 0
    %831 = vmatpush.bf16.msra.mxu0 0
    %832 = vmatpush.bf16.msra.mxu0 %v820
    %833 = vmatpush.bf16.msra.mxu0 %v819
    %834 = vmatmul.bf16.gmra.mxu0 %v824
    %v835 = vpop.f32.mrf.mxu0
    %v836 = vadd.f32 %v809, %v835
    %v837 = vpop.f32.mrf.mxu0
    %v838 = vadd.f32 %v809, %v837
    %839 = vdwg.mxu0
    %v840 = vld [vmem:[%s13] sm:$0xf]
    %v841 = vld [vmem:[%s13 + $0x4] sm:$0xf]
    %v842 = vld [vmem:[%s13 + $0x8] sm:$0xf]
    %v843 = vld [vmem:[%s13 + $0xc] sm:$0xf]
    %v844 = vld [vmem:[%s14] sm:$0x1]
    %v845 = vpack.c.bf16 %v838, %v836
    %v847 = vperm.slane %v844, 0
    %v853 = vunpack.c.l.b16 %v840
    %v854 = vunpack.c.l.b16 %v841
    %v855 = vunpack.c.l.b16 %v842
    %v856 = vunpack.c.l.b16 %v843
    %v857 = vpack.c.b16 %v854, %v853
    %v858 = vpack.c.b16 %v856, %v855
    %v862 = vsel %vm88, %v845, 0
    %864 = vmatpush.bf16.msra.mxu0 0
    %865 = vmatpush.bf16.msra.mxu0 0
    %866 = vmatpush.bf16.msra.mxu0 0
    %867 = vmatpush.bf16.msra.mxu0 0
    %868 = vmatpush.bf16.msra.mxu0 0
    %869 = vmatpush.bf16.msra.mxu0 0
    %870 = vmatpush.bf16.msra.mxu0 %v858
    %871 = vmatpush.bf16.msra.mxu0 %v857
    %872 = vmatmul.bf16.gmra.mxu0 %v862
    %v873 = vpop.f32.mrf.mxu0
    %v874 = vadd.f32 %v847, %v873
    %v875 = vpop.f32.mrf.mxu0
    %v876 = vadd.f32 %v847, %v875
    %877 = vdwg.mxu0
    %878 = vst [vmem:[#allocation2] sm:$0xff] %v874
    %879 = vst [vmem:[#allocation2 + $0x8] sm:$0xff] %v876
    %880 = vst.msk [vmem:[#allocation4] sm:$0xff] %vm363, %v721
    %881 = vst.msk [vmem:[#allocation4 + $0x8] sm:$0xff] %vm363, %v722
    // Predicated region
    $region62: #{tpu_custom_call.1} parent=1 // pred_check
      _
    $region63: #{tpu_custom_call.1} parent=1 // pred_check_branch
      %883 = sbr.rel (0) target = $region65
    $region64: #{tpu_custom_call.1} parent=1 // pred_region
      %885 = vsyncadd [#allocation3], 0
      %s886 = sshll.u32 [#allocation2], 4
      %s887 = int_to_ptr.vmem [resolvable:$true] %s886
      %s888 = sshll.u32 %s15, 4
      %s889 = int_to_ptr.hbm [resolvable:$true] %s888
      %894 = dma.vmem_to_hbm [thread:$0]  %s887, 256, %s889, [#allocation3], 128, 128, 8
    $region65: #{tpu_custom_call.1} parent=1 // pred_fallthru
      _
    // Predicated region
    $region66: #{tpu_custom_call.1} parent=1 // pred_check
      _
    $region67: #{tpu_custom_call.1} parent=1 // pred_check_branch
      %896 = sbr.rel (0) target = $region69
    $region68: #{tpu_custom_call.1} parent=1 // pred_region
      %898 = vsyncadd [#allocation5], 0
      %s899 = sshll.u32 [#allocation4], 4
      %s900 = int_to_ptr.vmem [resolvable:$true] %s899
      %s901 = sshll.u32 %s16, 4
      %s902 = int_to_ptr.hbm [resolvable:$true] %s901
      %907 = dma.vmem_to_hbm [thread:$0]  %s900, 256, %s902, [#allocation5], 128, 128, 8
    $region69: #{tpu_custom_call.1} parent=1 // pred_fallthru
      _
    // Predicated region
    $region70: #{tpu_custom_call.1} parent=1 // pred_check
      _
    $region71: #{tpu_custom_call.1} parent=1 // pred_check_branch
      %909 = sbr.rel (0) target = $region73
    $region72: #{tpu_custom_call.1} parent=1 // pred_region
      %911 = dma.done [#allocation3], 256
    $region73: #{tpu_custom_call.1} parent=1 // pred_fallthru
      _
    // Predicated region
    $region74: #{tpu_custom_call.1} parent=1 // pred_check
      _
    $region75: #{tpu_custom_call.1} parent=1 // pred_check_branch
      %913 = sbr.rel (0) target = $region77
    $region76: #{tpu_custom_call.1} parent=1 // pred_region
      %915 = dma.done [#allocation5], 256
    $region77: #{tpu_custom_call.1} parent=1 // pred_fallthru
      _
    %916 = vsyncpa [#allocation3], 1
    %917 = vsyncpa [#allocation5], 1

</llo_original>
